<compile_context>
chip_gen: v6e
topology: v6e:2x2x1
jax: 0.10.0
libtpu: 0.0.40
codegen_flags: <defaults>
</compile_context>

<pallas_src>
import functools

import jax
import jax.numpy as jnp
from jax import lax
from jax.experimental import pallas as pl
from jax.experimental.pallas import tpu as pltpu


def _tpu_generation():
    """Best-effort TPU generation detection ('v5' | 'v6' | 'v7' | 'unknown')."""
    try:
        kind = jax.devices()[0].device_kind.lower().replace(" ", "")
    except Exception:
        return "unknown"
    if "v5" in kind:
        return "v5"
    if "v6" in kind:
        return "v6"
    if "v7" in kind or "7x" in kind:
        return "v7"
    return "unknown"


def _make_kernel(use_bf16_matmul: bool):
    """Fused Linear -> ReLU -> Linear -> LayerNorm kernel body (lane-folded layout)."""

    mm_dtype = jnp.bfloat16 if use_bf16_matmul else jnp.float32
    dot_kwargs = dict(preferred_element_type=jnp.float32)
    if not use_bf16_matmul:
        # Pin the f32 dot decomposition so the accuracy path cannot silently regress.
        dot_kwargs["precision"] = lax.Precision.HIGHEST

    def kernel(x_ref, w1_ref, w2_ref, avg_ref, vec_ref, o_ref):
        # Load x once, directly in the matmul dtype (avoids a double cast pass).
        x = x_ref[...].astype(mm_dtype)
        w1 = w1_ref[...]                      # already in mm_dtype (wrapper cast)
        w2 = w2_ref[...]
        avg = avg_ref[...]                    # block-diag group-averaging matrix
        vecs = vec_ref[...]                   # (4, d_hid_f) f32: b1, b2, gamma, beta
        b1 = vecs[0:1, :]
        b2 = vecs[1:2, :]
        gamma = vecs[2:3, :]
        beta = vecs[3:4, :]

        # Linear1 + ReLU (MXU + VPU; element-wise math stays f32 on all generations).
        h = jnp.dot(x, w1, **dot_kwargs) + b1
        h = jnp.maximum(h, 0.0)

        # Linear2 (MXU).
        y = jnp.dot(h.astype(mm_dtype), w2, **dot_kwargs) + b2

        # LayerNorm per *original* row in the lane-folded layout.  `avg` is
        # block-diagonal (fold copies of ones(d_hidden, d_hidden)/d_hidden), so
        # v @ avg broadcasts each d_hidden-lane group's mean across that group.
        if use_bf16_matmul:
            def group_mean(v):
                # hi/lo split keeps the statistics ~f32-accurate on single-pass bf16.
                v_hi = v.astype(jnp.bfloat16)
                v_lo = (v - v_hi.astype(jnp.float32)).astype(jnp.bfloat16)
                return (jnp.dot(v_hi, avg, preferred_element_type=jnp.float32)
                        + jnp.dot(v_lo, avg, preferred_element_type=jnp.float32))
        else:
            def group_mean(v):
                # HIGHEST-precision f32 dot is already accurate; one dot is enough.
                return jnp.dot(v, avg, **dot_kwargs)

        # Independent stats dots (pipeline back-to-back on the MXU); clamp the fused
        # variance at 0 to guard against cancellation.
        mean = group_mean(y)
        meansq = group_mean(y * y)
        var = jnp.maximum(meansq - mean * mean, 0.0)

        y_norm = (y - mean) * lax.rsqrt(var + 1e-5)       # PyTorch LayerNorm eps
        o_ref[...] = (y_norm * gamma + beta).astype(o_ref.dtype)

    return kernel


@functools.partial(jax.jit, static_argnames=("block_rows", "use_bf16_matmul"))
def init_embedder_1d(f1d, w1, b1, w2, b2, gamma, beta, *,
                     block_rows=None, use_bf16_matmul=True):
    """LayerNorm(Linear2(ReLU(Linear1(f1d)))) over the last dim of f1d.

    Weights are (in_features, out_features): the kernel computes x @ W + b.
    """
    *lead, d_in = f1d.shape
    d_hidden = w1.shape[1]
    n_rows = 1
    for d in lead:
        n_rows *= d
    x2d = f1d.reshape(n_rows, d_in)

    # ---- generation-aware targets -------------------------------------------
    gen = _tpu_generation()
    lane_target = 128 if gen == "v5" else 256               # MXU pass width in lanes
    vmem_limit = (32 if gen == "v7" else 64) * 1024 * 1024  # v7x: 64 MiB physical VMEM
    tile_bytes = (2 if gen == "v7" else 4) * 1024 * 1024    # input-tile target

    mm_dtype = jnp.bfloat16 if use_bf16_matmul else jnp.float32

    # ---- lane folding (make stores 128/256-lane dense) ------------------------
    fold = 1
    if d_hidden < lane_target:
        for f in range(lane_target // d_hidden, 0, -1):
            if (f * d_hidden) % 128 == 0:
                fold = f
                break

    # Zero-pad rows to a multiple of `fold` (sliced off after) instead of giving up
    # the lane-dense path when n_rows % fold != 0.
    n_pad = ((n_rows + fold - 1) // fold) * fold
    if n_pad != n_rows:
        x2d = jnp.concatenate(
            [x2d, jnp.zeros((n_pad - n_rows, d_in), x2d.dtype)], axis=0)

    if fold > 1:
        eye = jnp.eye(fold, dtype=jnp.float32)
        w1k = jnp.kron(eye, w1.astype(jnp.float32))          # block-diag, fold x W1
        w2k = jnp.kron(eye, w2.astype(jnp.float32))          # block-diag, fold x W2
        b1k, b2k = jnp.tile(b1, fold), jnp.tile(b2, fold)
        gk, bk = jnp.tile(gamma, fold), jnp.tile(beta, fold)
    else:
        w1k, w2k, b1k, b2k, gk, bk = w1, w2, b1, b2, gamma, beta

    d_in_f = fold * d_in
    d_hid_f = fold * d_hidden

    # Block-diagonal group-averaging matrix for folded LayerNorm statistics.
    avg = jnp.kron(jnp.eye(fold, dtype=jnp.float32),
                   jnp.full((d_hidden, d_hidden), 1.0 / d_hidden, jnp.float32))

    # Constants pre-cast to the matmul dtype (less VMEM, no in-kernel cast passes).
    w1k = w1k.astype(mm_dtype)
    w2k = w2k.astype(mm_dtype)
    avg = avg.astype(mm_dtype)
    vecs = jnp.stack([b1k, b2k, gk, bk], axis=0).astype(jnp.float32)  # (4, d_hid_f)

    nf = n_pad // fold
    xf = x2d.reshape(nf, d_in_f)                             # free, contiguous reshape

    # ---- row-tile selection ----------------------------------------------------
    # Big tiles amortize the ~0.35us/grid-step overhead.  The whole-tile body keeps
    # several full-size f32 temporaries live, so the tile target is conservative on
    # v7x (64 MiB VMEM) and larger on v5e/v6e (128 MiB).
    if block_rows is None:
        row_bytes = max(d_in_f, d_hid_f) * jnp.dtype(f1d.dtype).itemsize
        block_rows = tile_bytes // row_bytes
    block_rows = max(8, (int(block_rows) // 8) * 8)
    bf = nf if nf <= block_rows else block_rows              # full dim or multiple of 8

    grid = (pl.cdiv(nf, bf),)

    out_f = pl.pallas_call(
        _make_kernel(use_bf16_matmul),
        out_shape=jax.ShapeDtypeStruct((nf, d_hid_f), f1d.dtype),
        grid_spec=pltpu.PrefetchScalarGridSpec(
            num_scalar_prefetch=0,
            grid=grid,
            in_specs=[
                pl.BlockSpec((bf, d_in_f), lambda i: (i, 0)),          # x row tile
                pl.BlockSpec((d_in_f, d_hid_f), lambda i: (0, 0)),     # W1 (block-diag)
                pl.BlockSpec((d_hid_f, d_hid_f), lambda i: (0, 0)),    # W2 (block-diag)
                pl.BlockSpec((d_hid_f, d_hid_f), lambda i: (0, 0)),    # LN avg matrix
                pl.BlockSpec((4, d_hid_f), lambda i: (0, 0)),          # b1,b2,gamma,beta
            ],
            out_specs=pl.BlockSpec((bf, d_hid_f), lambda i: (i, 0)),
        ),
        compiler_params=pltpu.CompilerParams(
            dimension_semantics=("parallel",),     # lets v7x shard row tiles over TCs
            vmem_limit_bytes=vmem_limit,
        ),
    )(xf, w1k, w2k, avg, vecs)

    out = out_f.reshape(n_pad, d_hidden)[:n_rows]
    return out.reshape(*lead, d_hidden)


def _reference(f1d, w1, b1, w2, b2, gamma, beta):
    h = jnp.maximum(f1d @ w1 + b1, 0.0)
    y = h @ w2 + b2
    mean = jnp.mean(y, axis=-1, keepdims=True)
    var = jnp.mean((y - mean) ** 2, axis=-1, keepdims=True)
    return (y - mean) / jnp.sqrt(var + 1e-5) * gamma + beta


if __name__ == "__main__":
    # Small shapes consistent with the module's 1D usage: (batch, seq, d_in).
    batch, seq, d_in, d_hidden = 2, 8, 32, 32

    key = jax.random.PRNGKey(0)
    kx, kw1, kb1, kw2, kb2 = jax.random.split(key, 5)

    f1d = jax.random.normal(kx, (batch, seq, d_in), dtype=jnp.float32)

    # Deterministic parameter init (PyTorch-Linear-style uniform ranges).
    lim1 = 1.0 / jnp.sqrt(jnp.float32(d_in))
    lim2 = 1.0 / jnp.sqrt(jnp.float32(d_hidden))
    w1 = jax.random.uniform(kw1, (d_in, d_hidden), jnp.float32, -lim1, lim1)
    b1 = jax.random.uniform(kb1, (d_hidden,), jnp.float32, -lim1, lim1)
    w2 = jax.random.uniform(kw2, (d_hidden, d_hidden), jnp.float32, -lim2, lim2)
    b2 = jax.random.uniform(kb2, (d_hidden,), jnp.float32, -lim2, lim2)
    gamma = jnp.ones((d_hidden,), jnp.float32)   # LayerNorm weight init
    beta = jnp.zeros((d_hidden,), jnp.float32)   # LayerNorm bias init

    ref = _reference(f1d, w1, b1, w2, b2, gamma, beta)

    # Default path: single-pass bf16 MXU for all dots (fast path); LN statistics are
    # protected by the hi/lo split, so only the bf16 weight/activation rounding of
    # the two Linears shows up in the error (percent-level).
    out = jax.block_until_ready(init_embedder_1d(f1d, w1, b1, w2, b2, gamma, beta))
    if out.shape != ref.shape:
        raise AssertionError(f"shape mismatch: {out.shape} vs {ref.shape}")
    if not jnp.allclose(out, ref, atol=8e-2, rtol=5e-2):
        raise AssertionError("bf16 fast path deviates too much from reference")

    # Accuracy-reference path: f32 dots with precision pinned to HIGHEST.
    out_f32 = jax.block_until_ready(
        init_embedder_1d(f1d, w1, b1, w2, b2, gamma, beta, use_bf16_matmul=False))
    if not jnp.allclose(out_f32, ref, atol=1e-4, rtol=1e-4):
        raise AssertionError("f32 path does not match reference")

    print("KERNEL_OK")
</pallas_src>

<mosaic_0001>
module attributes {stable_mosaic.version = 11 : i64} {
  func.func @kernel(%arg0: i32, %arg1: memref<2x256xf32, #tpu.memory_space<vmem>>, %arg2: memref<256x256xbf16, #tpu.memory_space<vmem>>, %arg3: memref<256x256xbf16, #tpu.memory_space<vmem>>, %arg4: memref<256x256xbf16, #tpu.memory_space<vmem>>, %arg5: memref<4x256xf32, #tpu.memory_space<vmem>>, %arg6: memref<2x256xf32, #tpu.memory_space<vmem>>) attributes {dimension_semantics = [#tpu.dimension_semantics<parallel>], iteration_bounds = array<i64: 1>, scalar_prefetch = 0 : i64, scratch_operands = 0 : i64, tpu.core_type = #tpu.core_type<tc>, window_params = [{transform_indices = @transform_0, window_bounds = array<i64: 2, 256>}, {pipeline_mode = #tpu.pipeline_mode<synchronous>, transform_indices = @transform_1, window_bounds = array<i64: 256, 256>}, {pipeline_mode = #tpu.pipeline_mode<synchronous>, transform_indices = @transform_2, window_bounds = array<i64: 256, 256>}, {pipeline_mode = #tpu.pipeline_mode<synchronous>, transform_indices = @transform_3, window_bounds = array<i64: 256, 256>}, {pipeline_mode = #tpu.pipeline_mode<synchronous>, transform_indices = @transform_4, window_bounds = array<i64: 4, 256>}, {transform_indices = @transform_5, window_bounds = array<i64: 2, 256>}]} {
    %c0 = arith.constant 0 : index
    %c0_0 = arith.constant 0 : index
    %0 = vector.load %arg1[%c0, %c0_0] : memref<2x256xf32, #tpu.memory_space<vmem>>, vector<2x256xf32>
    %1 = arith.truncf %0 : vector<2x256xf32> to vector<2x256xbf16>
    %c0_1 = arith.constant 0 : index
    %c0_2 = arith.constant 0 : index
    %2 = vector.load %arg2[%c0_1, %c0_2] : memref<256x256xbf16, #tpu.memory_space<vmem>>, vector<256x256xbf16>
    %c0_3 = arith.constant 0 : index
    %c0_4 = arith.constant 0 : index
    %3 = vector.load %arg3[%c0_3, %c0_4] : memref<256x256xbf16, #tpu.memory_space<vmem>>, vector<256x256xbf16>
    %c0_5 = arith.constant 0 : index
    %c0_6 = arith.constant 0 : index
    %4 = vector.load %arg4[%c0_5, %c0_6] : memref<256x256xbf16, #tpu.memory_space<vmem>>, vector<256x256xbf16>
    %c0_7 = arith.constant 0 : index
    %c0_8 = arith.constant 0 : index
    %5 = vector.load %arg5[%c0_7, %c0_8] : memref<4x256xf32, #tpu.memory_space<vmem>>, vector<4x256xf32>
    %6 = vector.extract_strided_slice %5 {offsets = [0, 0], sizes = [1, 256], strides = [1, 1]} : vector<4x256xf32> to vector<1x256xf32>
    %7 = vector.extract_strided_slice %5 {offsets = [1, 0], sizes = [1, 256], strides = [1, 1]} : vector<4x256xf32> to vector<1x256xf32>
    %8 = vector.extract_strided_slice %5 {offsets = [2, 0], sizes = [1, 256], strides = [1, 1]} : vector<4x256xf32> to vector<1x256xf32>
    %9 = vector.extract_strided_slice %5 {offsets = [3, 0], sizes = [1, 256], strides = [1, 1]} : vector<4x256xf32> to vector<1x256xf32>
    %cst = arith.constant dense<0.000000e+00> : vector<2x256xf32>
    %10 = tpu.matmul %1, %2, %cst {dimension_numbers = #tpu.dot_dimension_numbers<[1], [0], [0], [1], [0, 0, 1, 1], [], []>} : vector<2x256xbf16>, vector<256x256xbf16>, vector<2x256xf32> -> vector<2x256xf32>
    %11 = vector.broadcast %6 : vector<1x256xf32> to vector<2x256xf32>
    %12 = arith.addf %10, %11 : vector<2x256xf32>
    %cst_9 = arith.constant 0.000000e+00 : f32
    %13 = vector.broadcast %cst_9 : f32 to vector<2x256xf32>
    %14 = arith.maximumf %12, %13 : vector<2x256xf32>
    %15 = arith.truncf %14 : vector<2x256xf32> to vector<2x256xbf16>
    %cst_10 = arith.constant dense<0.000000e+00> : vector<2x256xf32>
    %16 = tpu.matmul %15, %3, %cst_10 {dimension_numbers = #tpu.dot_dimension_numbers<[1], [0], [0], [1], [0, 0, 1, 1], [], []>} : vector<2x256xbf16>, vector<256x256xbf16>, vector<2x256xf32> -> vector<2x256xf32>
    %17 = vector.broadcast %7 : vector<1x256xf32> to vector<2x256xf32>
    %18 = arith.addf %16, %17 : vector<2x256xf32>
    %19 = arith.truncf %18 : vector<2x256xf32> to vector<2x256xbf16>
    %20 = arith.extf %19 : vector<2x256xbf16> to vector<2x256xf32>
    %21 = arith.subf %18, %20 : vector<2x256xf32>
    %22 = arith.truncf %21 : vector<2x256xf32> to vector<2x256xbf16>
    %cst_11 = arith.constant dense<0.000000e+00> : vector<2x256xf32>
    %23 = tpu.matmul %19, %4, %cst_11 {dimension_numbers = #tpu.dot_dimension_numbers<[1], [0], [0], [1], [0, 0, 1, 1], [], []>} : vector<2x256xbf16>, vector<256x256xbf16>, vector<2x256xf32> -> vector<2x256xf32>
    %cst_12 = arith.constant dense<0.000000e+00> : vector<2x256xf32>
    %24 = tpu.matmul %22, %4, %cst_12 {dimension_numbers = #tpu.dot_dimension_numbers<[1], [0], [0], [1], [0, 0, 1, 1], [], []>} : vector<2x256xbf16>, vector<256x256xbf16>, vector<2x256xf32> -> vector<2x256xf32>
    %25 = arith.addf %23, %24 : vector<2x256xf32>
    %26 = arith.mulf %18, %18 : vector<2x256xf32>
    %27 = arith.truncf %26 : vector<2x256xf32> to vector<2x256xbf16>
    %28 = arith.extf %27 : vector<2x256xbf16> to vector<2x256xf32>
    %29 = arith.subf %26, %28 : vector<2x256xf32>
    %30 = arith.truncf %29 : vector<2x256xf32> to vector<2x256xbf16>
    %cst_13 = arith.constant dense<0.000000e+00> : vector<2x256xf32>
    %31 = tpu.matmul %27, %4, %cst_13 {dimension_numbers = #tpu.dot_dimension_numbers<[1], [0], [0], [1], [0, 0, 1, 1], [], []>} : vector<2x256xbf16>, vector<256x256xbf16>, vector<2x256xf32> -> vector<2x256xf32>
    %cst_14 = arith.constant dense<0.000000e+00> : vector<2x256xf32>
    %32 = tpu.matmul %30, %4, %cst_14 {dimension_numbers = #tpu.dot_dimension_numbers<[1], [0], [0], [1], [0, 0, 1, 1], [], []>} : vector<2x256xbf16>, vector<256x256xbf16>, vector<2x256xf32> -> vector<2x256xf32>
    %33 = arith.addf %31, %32 : vector<2x256xf32>
    %34 = arith.mulf %25, %25 : vector<2x256xf32>
    %35 = arith.subf %33, %34 : vector<2x256xf32>
    %cst_15 = arith.constant 0.000000e+00 : f32
    %36 = vector.broadcast %cst_15 : f32 to vector<2x256xf32>
    %37 = arith.maximumf %35, %36 : vector<2x256xf32>
    %38 = arith.subf %18, %25 : vector<2x256xf32>
    %cst_16 = arith.constant 9.99999974E-6 : f32
    %39 = vector.broadcast %cst_16 : f32 to vector<2x256xf32>
    %40 = arith.addf %37, %39 : vector<2x256xf32>
    %41 = math.rsqrt %40 : vector<2x256xf32>
    %42 = arith.mulf %38, %41 : vector<2x256xf32>
    %43 = vector.broadcast %8 : vector<1x256xf32> to vector<2x256xf32>
    %44 = arith.mulf %42, %43 : vector<2x256xf32>
    %45 = vector.broadcast %9 : vector<1x256xf32> to vector<2x256xf32>
    %46 = arith.addf %44, %45 : vector<2x256xf32>
    %c0_17 = arith.constant 0 : index
    %c0_18 = arith.constant 0 : index
    %47 = vector.load %arg6[%c0_17, %c0_18] : memref<2x256xf32, #tpu.memory_space<vmem>>, vector<2x256xf32>
    tpu.vector_store %arg6[%c0_17, %c0_18], %46 {strides = array<i32>} : memref<2x256xf32, #tpu.memory_space<vmem>>, vector<2x256xf32>,
    return
  }
  func.func @transform_0(%arg0: i32) -> (i32, i32) {
    %c0_i32 = arith.constant 0 : i32
    %c0_i32_0 = arith.constant 0 : i32
    return %arg0, %c0_i32 : i32, i32
  }
  func.func @transform_1(%arg0: i32) -> (i32, i32) {
    %c0_i32 = arith.constant 0 : i32
    %c0_i32_0 = arith.constant 0 : i32
    %c0_i32_1 = arith.constant 0 : i32
    return %c0_i32, %c0_i32_0 : i32, i32
  }
  func.func @transform_2(%arg0: i32) -> (i32, i32) {
    %c0_i32 = arith.constant 0 : i32
    %c0_i32_0 = arith.constant 0 : i32
    %c0_i32_1 = arith.constant 0 : i32
    return %c0_i32, %c0_i32_0 : i32, i32
  }
  func.func @transform_3(%arg0: i32) -> (i32, i32) {
    %c0_i32 = arith.constant 0 : i32
    %c0_i32_0 = arith.constant 0 : i32
    %c0_i32_1 = arith.constant 0 : i32
    return %c0_i32, %c0_i32_0 : i32, i32
  }
  func.func @transform_4(%arg0: i32) -> (i32, i32) {
    %c0_i32 = arith.constant 0 : i32
    %c0_i32_0 = arith.constant 0 : i32
    %c0_i32_1 = arith.constant 0 : i32
    return %c0_i32, %c0_i32_0 : i32, i32
  }
  func.func @transform_5(%arg0: i32) -> (i32, i32) {
    %c0_i32 = arith.constant 0 : i32
    %c0_i32_0 = arith.constant 0 : i32
    return %arg0, %c0_i32 : i32, i32
  }
}

</mosaic_0001>

<llo_original>
// kernel: tile.23
$region0: #{tile.23}
  #allocation0 [shape = 's32[1]{0}', space=sflag, size = 0x4, scoped, tag = 'scoped memory for tile.23']
  %s0 = inlined_call_operand.vmem [shape: f32[32], index: 0, kind: input, shape index: {}]
  %s1 = inlined_call_operand.vmem [shape: f32[8,32], index: 1, kind: output, shape index: {}]
  // Predicated region
  $region2: #{tile.23} parent=0 // pred_check
    _
  $region3: #{tile.23} parent=0 // pred_check_branch
    %3 = sbr.rel (0) target = $region5
  $region4: #{tile.23} parent=0 // pred_region
    _
  $region5: #{tile.23} parent=0 // pred_fallthru
    _
  %v4 = vld [vmem:[%s0] ss:$0 sm:$0xff]
  %5 = vst [vmem:[%s1] sm:$0xff] %v4

// kernel: tile.36
$region0: #{tile.36}
  %s0 = inlined_call_operand.vmem [shape: f32[8,32], index: 0, kind: input, shape index: {}]
  %s1 = inlined_call_operand.vmem [shape: f32[1,256], index: 1, kind: output, shape index: {}]
  $region1: #{tile.36} parent=0
    #allocation0 [shape = 'u8[8192]{0}', space=vmem, size = 0x2000, scoped, tag = 'scoped mem for output reshape']
    %s2 = smov 3
    %v3 = vld [vmem:[%s0] ss:$4 sm:%s2]
    %vm4 = vcmask 261120
    %5 = vst.msk [vmem:[#allocation0] ss:$8 sm:$0x3] %vm4, %v3
    %s6 = scalar_lea.vmem %s0, 3
    %s7 = smov 3
    %v8 = vld [vmem:[%s6] ss:$4 sm:%s7]
    %9 = vrot.lane.b32.xlu0 %v8, 96
    %v10 = vpop.permute.xlu0 %9
    %vm11 = vcmask 1048320
    %12 = vst.msk [vmem:[#allocation0] ss:$8 sm:$0x3] %vm11, %v10
    %s13 = scalar_lea.vmem %s0, 2
    %s14 = smov 3
    %v15 = vld [vmem:[%s13] ss:$4 sm:%s14]
    %16 = vrot.lane.b32.xlu0 %v15, 64
    %v17 = vpop.permute.xlu0 %16
    %vm18 = vcmask 785920
    %19 = vst.msk [vmem:[#allocation0] ss:$8 sm:$0x3] %vm18, %v17
    %s20 = scalar_lea.vmem %s0, 1
    %s21 = smov 3
    %v22 = vld [vmem:[%s20] ss:$4 sm:%s21]
    %23 = vrot.lane.b32.xlu0 %v22, 32
    %v24 = vpop.permute.xlu0 %23
    %vm25 = vcmask 523520
    %26 = vst.msk [vmem:[#allocation0] ss:$8 sm:$0x3] %vm25, %v24
    %s28 = sshll.u32 1, 1
    %s29 = ssub.s32 %s28, 1
    %v31 = vld [vmem:[#allocation0] sm:%s29]
    %s32 = sshll.u32 1, 1
    %s33 = ssub.s32 %s32, 1
    %34 = vst [vmem:[%s1] sm:%s33] %v31
    %s35 = scalar_lea.vmem [#allocation0], 8
    %v36 = vld [vmem:[%s35] sm:%s29]
    %s37 = sshll.u32 1, 1
    %s38 = ssub.s32 %s37, 1
    %s39 = scalar_lea.vmem %s1, 1
    %40 = vst [vmem:[%s39] sm:%s38] %v36

// kernel: init_embedder_1d.1
$region0: #{init_embedder_1d.1}
  #allocation0 [shape = 'u32[]', space=smem, size = 0x4, offset = 0x4, fixed_abs, tag = 'smem constant byte address 0x4 - core index']
  #allocation1 [shape = 'u32[144,128]{1,0:T(1,128)}', space=vmem, size = 0x12000, scoped, tag = 'internal scratch']
  %s0 = inlined_call_operand.vmem [shape: f32[2,256], index: 0, kind: input, shape index: {}]
  %s1 = inlined_call_operand.vmem [shape: bf16[256,256], index: 1, kind: input, shape index: {}]
  %s2 = inlined_call_operand.vmem [shape: bf16[256,256], index: 2, kind: input, shape index: {}]
  %s3 = inlined_call_operand.vmem [shape: bf16[256,256], index: 3, kind: input, shape index: {}]
  %s4 = inlined_call_operand.vmem [shape: f32[4,256], index: 4, kind: input, shape index: {}]
  %s5 = inlined_call_operand.vmem [shape: f32[2,256], index: 5, kind: output, shape index: {}]
  %s6 = sld [smem:[#allocation0]]
  $region30: #{init_embedder_1d.1} parent=0
    _
  %s8 = ssub.s32 1, %s6
  %s9 = scalar_select 0, %s8, %s6
  // Predicated region
  $region2: #{init_embedder_1d.1} parent=0 // pred_check
    _
  $region3: #{init_embedder_1d.1} parent=0 // pred_check_branch
    %11 = sbr.rel (0) target = $region5
  $region4: #{init_embedder_1d.1} parent=0 // pred_region
    _
  $region5: #{init_embedder_1d.1} parent=0 // pred_fallthru
    _
  // Predicated region
  $region6: #{init_embedder_1d.1} parent=0 // pred_check
    _
  $region7: #{init_embedder_1d.1} parent=0 // pred_check_branch
    %13 = sbr.rel (0) target = $region9
  $region8: #{init_embedder_1d.1} parent=0 // pred_region
    _
  $region9: #{init_embedder_1d.1} parent=0 // pred_fallthru
    _
  // Predicated region
  $region10: #{init_embedder_1d.1} parent=0 // pred_check
    _
  $region11: #{init_embedder_1d.1} parent=0 // pred_check_branch
    %15 = sbr.rel (0) target = $region13
  $region12: #{init_embedder_1d.1} parent=0 // pred_region
    _
  $region13: #{init_embedder_1d.1} parent=0 // pred_fallthru
    _
  // Predicated region
  $region14: #{init_embedder_1d.1} parent=0 // pred_check
    _
  $region15: #{init_embedder_1d.1} parent=0 // pred_check_branch
    %17 = sbr.rel (0) target = $region17
  $region16: #{init_embedder_1d.1} parent=0 // pred_region
    _
  $region17: #{init_embedder_1d.1} parent=0 // pred_fallthru
    _
  // Predicated region
  $region18: #{init_embedder_1d.1} parent=0 // pred_check
    _
  $region19: #{init_embedder_1d.1} parent=0 // pred_check_branch
    %19 = sbr.rel (0) target = $region21
  $region20: #{init_embedder_1d.1} parent=0 // pred_region
    _
  $region21: #{init_embedder_1d.1} parent=0 // pred_fallthru
    _
  %v20 = vld [vmem:[%s0] sm:$0xf]
  %v23 = vunpack.c.l.s4 1983009808
  %v24 = vunpack.c.0.s8 %v23
  %v25 = vlaneseq
  %v26 = vshrl.u32 %v25, 7
  %v27 = vsub.s32 %v24, %v26
  %v28 = vrot.slane %v20, %v27
  %v29 = vcombine.high %v28, %v28
  %v32 = vpack.c.bf16 %v28, %v28
  %v33 = vpack.c.bf16 %v29, %v29
  %v34 = vld [vmem:[%s1] sm:$0xff]
  %v35 = vld [vmem:[%s1 + $0x8] sm:$0xff]
  %v36 = vld [vmem:[%s1 + $0x10] sm:$0xff]
  %v37 = vld [vmem:[%s1 + $0x18] sm:$0xff]
  %v38 = vld [vmem:[%s1 + $0x20] sm:$0xff]
  %v39 = vld [vmem:[%s1 + $0x28] sm:$0xff]
  %v40 = vld [vmem:[%s1 + $0x30] sm:$0xff]
  %v41 = vld [vmem:[%s1 + $0x38] sm:$0xff]
  %v42 = vld [vmem:[%s1 + $0x40] sm:$0xff]
  %v43 = vld [vmem:[%s1 + $0x48] sm:$0xff]
  %v44 = vld [vmem:[%s1 + $0x50] sm:$0xff]
  %v45 = vld [vmem:[%s1 + $0x58] sm:$0xff]
  %v46 = vld [vmem:[%s1 + $0x60] sm:$0xff]
  %v47 = vld [vmem:[%s1 + $0x68] sm:$0xff]
  %v48 = vld [vmem:[%s1 + $0x70] sm:$0xff]
  %v49 = vld [vmem:[%s1 + $0x78] sm:$0xff]
  %v50 = vld [vmem:[%s1 + $0x80] sm:$0xff]
  %v51 = vld [vmem:[%s1 + $0x88] sm:$0xff]
  %v52 = vld [vmem:[%s1 + $0x90] sm:$0xff]
  %v53 = vld [vmem:[%s1 + $0x98] sm:$0xff]
  %v54 = vld [vmem:[%s1 + $0xa0] sm:$0xff]
  %v55 = vld [vmem:[%s1 + $0xa8] sm:$0xff]
  %v56 = vld [vmem:[%s1 + $0xb0] sm:$0xff]
  %v57 = vld [vmem:[%s1 + $0xb8] sm:$0xff]
  %v58 = vld [vmem:[%s1 + $0xc0] sm:$0xff]
  %v59 = vld [vmem:[%s1 + $0xc8] sm:$0xff]
  %v60 = vld [vmem:[%s1 + $0xd0] sm:$0xff]
  %v61 = vld [vmem:[%s1 + $0xd8] sm:$0xff]
  %v62 = vld [vmem:[%s1 + $0xe0] sm:$0xff]
  %v63 = vld [vmem:[%s1 + $0xe8] sm:$0xff]
  %v64 = vld [vmem:[%s1 + $0xf0] sm:$0xff]
  %v65 = vld [vmem:[%s1 + $0xf8] sm:$0xff]
  %v66 = vld [vmem:[%s2] sm:$0xff]
  %v67 = vld [vmem:[%s2 + $0x8] sm:$0xff]
  %v68 = vld [vmem:[%s2 + $0x10] sm:$0xff]
  %v69 = vld [vmem:[%s2 + $0x18] sm:$0xff]
  %v70 = vld [vmem:[%s2 + $0x20] sm:$0xff]
  %v71 = vld [vmem:[%s2 + $0x28] sm:$0xff]
  %v72 = vld [vmem:[%s2 + $0x30] sm:$0xff]
  %v73 = vld [vmem:[%s2 + $0x38] sm:$0xff]
  %v74 = vld [vmem:[%s2 + $0x40] sm:$0xff]
  %v75 = vld [vmem:[%s2 + $0x48] sm:$0xff]
  %v76 = vld [vmem:[%s2 + $0x50] sm:$0xff]
  %v77 = vld [vmem:[%s2 + $0x58] sm:$0xff]
  %v78 = vld [vmem:[%s2 + $0x60] sm:$0xff]
  %v79 = vld [vmem:[%s2 + $0x68] sm:$0xff]
  %v80 = vld [vmem:[%s2 + $0x70] sm:$0xff]
  %v81 = vld [vmem:[%s2 + $0x78] sm:$0xff]
  %v82 = vld [vmem:[%s2 + $0x80] sm:$0xff]
  %v83 = vld [vmem:[%s2 + $0x88] sm:$0xff]
  %v84 = vld [vmem:[%s2 + $0x90] sm:$0xff]
  %v85 = vld [vmem:[%s2 + $0x98] sm:$0xff]
  %v86 = vld [vmem:[%s2 + $0xa0] sm:$0xff]
  %v87 = vld [vmem:[%s2 + $0xa8] sm:$0xff]
  %v88 = vld [vmem:[%s2 + $0xb0] sm:$0xff]
  %v89 = vld [vmem:[%s2 + $0xb8] sm:$0xff]
  %v90 = vld [vmem:[%s2 + $0xc0] sm:$0xff]
  %v91 = vld [vmem:[%s2 + $0xc8] sm:$0xff]
  %v92 = vld [vmem:[%s2 + $0xd0] sm:$0xff]
  %v93 = vld [vmem:[%s2 + $0xd8] sm:$0xff]
  %v94 = vld [vmem:[%s2 + $0xe0] sm:$0xff]
  %v95 = vld [vmem:[%s2 + $0xe8] sm:$0xff]
  %v96 = vld [vmem:[%s2 + $0xf0] sm:$0xff]
  %v97 = vld [vmem:[%s2 + $0xf8] sm:$0xff]
  %v98 = vld [vmem:[%s3] sm:$0xff]
  %v99 = vld [vmem:[%s3 + $0x8] sm:$0xff]
  %v100 = vld [vmem:[%s3 + $0x10] sm:$0xff]
  %v101 = vld [vmem:[%s3 + $0x18] sm:$0xff]
  %v102 = vld [vmem:[%s3 + $0x20] sm:$0xff]
  %v103 = vld [vmem:[%s3 + $0x28] sm:$0xff]
  %v104 = vld [vmem:[%s3 + $0x30] sm:$0xff]
  %v105 = vld [vmem:[%s3 + $0x38] sm:$0xff]
  %v106 = vld [vmem:[%s3 + $0x40] sm:$0xff]
  %v107 = vld [vmem:[%s3 + $0x48] sm:$0xff]
  %v108 = vld [vmem:[%s3 + $0x50] sm:$0xff]
  %v109 = vld [vmem:[%s3 + $0x58] sm:$0xff]
  %v110 = vld [vmem:[%s3 + $0x60] sm:$0xff]
  %v111 = vld [vmem:[%s3 + $0x68] sm:$0xff]
  %v112 = vld [vmem:[%s3 + $0x70] sm:$0xff]
  %v113 = vld [vmem:[%s3 + $0x78] sm:$0xff]
  %v114 = vld [vmem:[%s3 + $0x80] sm:$0xff]
  %v115 = vld [vmem:[%s3 + $0x88] sm:$0xff]
  %v116 = vld [vmem:[%s3 + $0x90] sm:$0xff]
  %v117 = vld [vmem:[%s3 + $0x98] sm:$0xff]
  %v118 = vld [vmem:[%s3 + $0xa0] sm:$0xff]
  %v119 = vld [vmem:[%s3 + $0xa8] sm:$0xff]
  %v120 = vld [vmem:[%s3 + $0xb0] sm:$0xff]
  %v121 = vld [vmem:[%s3 + $0xb8] sm:$0xff]
  %v122 = vld [vmem:[%s3 + $0xc0] sm:$0xff]
  %v123 = vld [vmem:[%s3 + $0xc8] sm:$0xff]
  %v124 = vld [vmem:[%s3 + $0xd0] sm:$0xff]
  %v125 = vld [vmem:[%s3 + $0xd8] sm:$0xff]
  %v126 = vld [vmem:[%s3 + $0xe0] sm:$0xff]
  %v127 = vld [vmem:[%s3 + $0xe8] sm:$0xff]
  %v128 = vld [vmem:[%s3 + $0xf0] sm:$0xff]
  %v129 = vld [vmem:[%s3 + $0xf8] sm:$0xff]
  %v130 = vld [vmem:[%s4] sm:$0xff]
  %v132 = vlaneseq
  %v133 = vshrl.u32 %v132, 7
  %v134 = vsub.s32 0, %v133
  %v135 = vrot.slane %v130, %v134
  %v136 = vlaneseq
  %v137 = vshrl.u32 %v136, 7
  %v138 = vsub.s32 4, %v137
  %v139 = vrot.slane %v130, %v138
  %v142 = vlaneseq
  %v143 = vshrl.u32 %v142, 7
  %v144 = vsub.s32 0, %v143
  %v145 = vrot.slane %v135, %v144
  %v146 = vlaneseq
  %v147 = vshrl.u32 %v146, 7
  %v148 = vsub.s32 0, %v147
  %v149 = vrot.slane %v139, %v148
  %v182 = vunpack.c.l.b16 %v34
  %v183 = vunpack.c.h.b16 %v34
  %v184 = vunpack.c.l.b16 %v35
  %v185 = vunpack.c.h.b16 %v35
  %v186 = vunpack.c.l.b16 %v36
  %v187 = vunpack.c.h.b16 %v36
  %v188 = vunpack.c.l.b16 %v37
  %v189 = vunpack.c.h.b16 %v37
  %v190 = vunpack.c.l.b16 %v38
  %v191 = vunpack.c.h.b16 %v38
  %v192 = vunpack.c.l.b16 %v39
  %v193 = vunpack.c.h.b16 %v39
  %v194 = vunpack.c.l.b16 %v40
  %v195 = vunpack.c.h.b16 %v40
  %v196 = vunpack.c.l.b16 %v41
  %v197 = vunpack.c.h.b16 %v41
  %v198 = vunpack.c.l.b16 %v42
  %v199 = vunpack.c.h.b16 %v42
  %v200 = vunpack.c.l.b16 %v43
  %v201 = vunpack.c.h.b16 %v43
  %v202 = vunpack.c.l.b16 %v44
  %v203 = vunpack.c.h.b16 %v44
  %v204 = vunpack.c.l.b16 %v45
  %v205 = vunpack.c.h.b16 %v45
  %v206 = vunpack.c.l.b16 %v46
  %v207 = vunpack.c.h.b16 %v46
  %v208 = vunpack.c.l.b16 %v47
  %v209 = vunpack.c.h.b16 %v47
  %v210 = vunpack.c.l.b16 %v48
  %v211 = vunpack.c.h.b16 %v48
  %v212 = vunpack.c.l.b16 %v49
  %v213 = vunpack.c.h.b16 %v49
  %v214 = vunpack.c.l.b16 %v50
  %v215 = vunpack.c.h.b16 %v50
  %v216 = vunpack.c.l.b16 %v51
  %v217 = vunpack.c.h.b16 %v51
  %v218 = vunpack.c.l.b16 %v52
  %v219 = vunpack.c.h.b16 %v52
  %v220 = vunpack.c.l.b16 %v53
  %v221 = vunpack.c.h.b16 %v53
  %v222 = vunpack.c.l.b16 %v54
  %v223 = vunpack.c.h.b16 %v54
  %v224 = vunpack.c.l.b16 %v55
  %v225 = vunpack.c.h.b16 %v55
  %v226 = vunpack.c.l.b16 %v56
  %v227 = vunpack.c.h.b16 %v56
  %v228 = vunpack.c.l.b16 %v57
  %v229 = vunpack.c.h.b16 %v57
  %v230 = vunpack.c.l.b16 %v58
  %v231 = vunpack.c.h.b16 %v58
  %v232 = vunpack.c.l.b16 %v59
  %v233 = vunpack.c.h.b16 %v59
  %v234 = vunpack.c.l.b16 %v60
  %v235 = vunpack.c.h.b16 %v60
  %v236 = vunpack.c.l.b16 %v61
  %v237 = vunpack.c.h.b16 %v61
  %v238 = vunpack.c.l.b16 %v62
  %v239 = vunpack.c.h.b16 %v62
  %v240 = vunpack.c.l.b16 %v63
  %v241 = vunpack.c.h.b16 %v63
  %v242 = vunpack.c.l.b16 %v64
  %v243 = vunpack.c.h.b16 %v64
  %v244 = vunpack.c.l.b16 %v65
  %v245 = vunpack.c.h.b16 %v65
  %v246 = vpack.c.b16 %v184, %v182
  %v247 = vpack.c.b16 %v185, %v183
  %v248 = vpack.c.b16 %v188, %v186
  %v249 = vpack.c.b16 %v189, %v187
  %v250 = vpack.c.b16 %v192, %v190
  %v251 = vpack.c.b16 %v193, %v191
  %v252 = vpack.c.b16 %v196, %v194
  %v253 = vpack.c.b16 %v197, %v195
  %v254 = vpack.c.b16 %v200, %v198
  %v255 = vpack.c.b16 %v201, %v199
  %v256 = vpack.c.b16 %v204, %v202
  %v257 = vpack.c.b16 %v205, %v203
  %v258 = vpack.c.b16 %v208, %v206
  %v259 = vpack.c.b16 %v209, %v207
  %v260 = vpack.c.b16 %v212, %v210
  %v261 = vpack.c.b16 %v213, %v211
  %v262 = vpack.c.b16 %v216, %v214
  %v263 = vpack.c.b16 %v217, %v215
  %v264 = vpack.c.b16 %v220, %v218
  %v265 = vpack.c.b16 %v221, %v219
  %v266 = vpack.c.b16 %v224, %v222
  %v267 = vpack.c.b16 %v225, %v223
  %v268 = vpack.c.b16 %v228, %v226
  %v269 = vpack.c.b16 %v229, %v227
  %v270 = vpack.c.b16 %v232, %v230
  %v271 = vpack.c.b16 %v233, %v231
  %v272 = vpack.c.b16 %v236, %v234
  %v273 = vpack.c.b16 %v237, %v235
  %v274 = vpack.c.b16 %v240, %v238
  %v275 = vpack.c.b16 %v241, %v239
  %v276 = vpack.c.b16 %v244, %v242
  %v277 = vpack.c.b16 %v245, %v243
  %310 = vmatprep.subr.bf16.mxu0 %v261
  %311 = vmatpush1.bf16.msra.mxu0 %v260
  %312 = vmatprep.subr.bf16.mxu0 %v259
  %313 = vmatpush1.bf16.msra.mxu0 %v258
  %314 = vmatprep.subr.bf16.mxu0 %v257
  %315 = vmatpush1.bf16.msra.mxu0 %v256
  %316 = vmatprep.subr.bf16.mxu0 %v255
  %317 = vmatpush1.bf16.msra.mxu0 %v254
  %318 = vmatprep.subr.bf16.mxu0 %v253
  %319 = vmatpush1.bf16.msra.mxu0 %v252
  %320 = vmatprep.subr.bf16.mxu0 %v251
  %321 = vmatpush1.bf16.msra.mxu0 %v250
  %322 = vmatprep.subr.bf16.mxu0 %v249
  %323 = vmatpush1.bf16.msra.mxu0 %v248
  %324 = vmatprep.subr.bf16.mxu0 %v247
  %325 = vmatpush1.bf16.msra.mxu0 %v246
  %326 = vmatprep.subr.bf16.mxu0 %v277
  %327 = vmatpush2.bf16.msra.mxu0 %v276
  %328 = vmatprep.subr.bf16.mxu0 %v275
  %329 = vmatpush2.bf16.msra.mxu0 %v274
  %330 = vmatprep.subr.bf16.mxu0 %v273
  %331 = vmatpush2.bf16.msra.mxu0 %v272
  %332 = vmatprep.subr.bf16.mxu0 %v271
  %333 = vmatpush2.bf16.msra.mxu0 %v270
  %334 = vmatprep.subr.bf16.mxu0 %v269
  %335 = vmatpush2.bf16.msra.mxu0 %v268
  %336 = vmatprep.subr.bf16.mxu0 %v267
  %337 = vmatpush2.bf16.msra.mxu0 %v266
  %338 = vmatprep.subr.bf16.mxu0 %v265
  %339 = vmatpush2.bf16.msra.mxu0 %v264
  %340 = vmatprep.subr.bf16.mxu0 %v263
  %341 = vmatpush2.bf16.msra.mxu0 %v262
  %342 = vmatprep.mubr.bf16.mxu0 %v33
  %343 = vmatmul.mubr.bf16.gmra.mxu0 %v32
  %v344 = vpop.f32.mrf.mxu0
  %v345 = vadd.f32 %v145, %v344
  %v346 = vpop.f32.mrf.mxu0
  %v347 = vadd.f32 %v149, %v346
  %v348 = vpop.f32.mrf.mxu0
  %v349 = vpop.f32.mrf.mxu0
  %350 = vdwg.mxu0
  %v351 = vmax.f32 %v345, 0.0
  %v352 = vmax.f32 %v347, 0.0
  %v353 = vpack.c.bf16 %v351, %v351
  %v354 = vpack.c.bf16 %v352, %v352
  %v355 = vlaneseq
  %v356 = vshrl.u32 %v355, 7
  %v357 = vsub.s32 1, %v356
  %v358 = vrot.slane %v130, %v357
  %v359 = vlaneseq
  %v360 = vshrl.u32 %v359, 7
  %v361 = vsub.s32 5, %v360
  %v362 = vrot.slane %v130, %v361
  %v365 = vlaneseq
  %v366 = vshrl.u32 %v365, 7
  %v367 = vsub.s32 1, %v366
  %v368 = vrot.slane %v358, %v367
  %v369 = vlaneseq
  %v370 = vshrl.u32 %v369, 7
  %v371 = vsub.s32 1, %v370
  %v372 = vrot.slane %v362, %v371
  %v405 = vunpack.c.l.b16 %v66
  %v406 = vunpack.c.h.b16 %v66
  %v407 = vunpack.c.l.b16 %v67
  %v408 = vunpack.c.h.b16 %v67
  %v409 = vunpack.c.l.b16 %v68
  %v410 = vunpack.c.h.b16 %v68
  %v411 = vunpack.c.l.b16 %v69
  %v412 = vunpack.c.h.b16 %v69
  %v413 = vunpack.c.l.b16 %v70
  %v414 = vunpack.c.h.b16 %v70
  %v415 = vunpack.c.l.b16 %v71
  %v416 = vunpack.c.h.b16 %v71
  %v417 = vunpack.c.l.b16 %v72
  %v418 = vunpack.c.h.b16 %v72
  %v419 = vunpack.c.l.b16 %v73
  %v420 = vunpack.c.h.b16 %v73
  %v421 = vunpack.c.l.b16 %v74
  %v422 = vunpack.c.h.b16 %v74
  %v423 = vunpack.c.l.b16 %v75
  %v424 = vunpack.c.h.b16 %v75
  %v425 = vunpack.c.l.b16 %v76
  %v426 = vunpack.c.h.b16 %v76
  %v427 = vunpack.c.l.b16 %v77
  %v428 = vunpack.c.h.b16 %v77
  %v429 = vunpack.c.l.b16 %v78
  %v430 = vunpack.c.h.b16 %v78
  %v431 = vunpack.c.l.b16 %v79
  %v432 = vunpack.c.h.b16 %v79
  %v433 = vunpack.c.l.b16 %v80
  %v434 = vunpack.c.h.b16 %v80
  %v435 = vunpack.c.l.b16 %v81
  %v436 = vunpack.c.h.b16 %v81
  %v437 = vunpack.c.l.b16 %v82
  %v438 = vunpack.c.h.b16 %v82
  %v439 = vunpack.c.l.b16 %v83
  %v440 = vunpack.c.h.b16 %v83
  %v441 = vunpack.c.l.b16 %v84
  %v442 = vunpack.c.h.b16 %v84
  %v443 = vunpack.c.l.b16 %v85
  %v444 = vunpack.c.h.b16 %v85
  %v445 = vunpack.c.l.b16 %v86
  %v446 = vunpack.c.h.b16 %v86
  %v447 = vunpack.c.l.b16 %v87
  %v448 = vunpack.c.h.b16 %v87
  %v449 = vunpack.c.l.b16 %v88
  %v450 = vunpack.c.h.b16 %v88
  %v451 = vunpack.c.l.b16 %v89
  %v452 = vunpack.c.h.b16 %v89
  %v453 = vunpack.c.l.b16 %v90
  %v454 = vunpack.c.h.b16 %v90
  %v455 = vunpack.c.l.b16 %v91
  %v456 = vunpack.c.h.b16 %v91
  %v457 = vunpack.c.l.b16 %v92
  %v458 = vunpack.c.h.b16 %v92
  %v459 = vunpack.c.l.b16 %v93
  %v460 = vunpack.c.h.b16 %v93
  %v461 = vunpack.c.l.b16 %v94
  %v462 = vunpack.c.h.b16 %v94
  %v463 = vunpack.c.l.b16 %v95
  %v464 = vunpack.c.h.b16 %v95
  %v465 = vunpack.c.l.b16 %v96
  %v466 = vunpack.c.h.b16 %v96
  %v467 = vunpack.c.l.b16 %v97
  %v468 = vunpack.c.h.b16 %v97
  %v469 = vpack.c.b16 %v407, %v405
  %v470 = vpack.c.b16 %v408, %v406
  %v471 = vpack.c.b16 %v411, %v409
  %v472 = vpack.c.b16 %v412, %v410
  %v473 = vpack.c.b16 %v415, %v413
  %v474 = vpack.c.b16 %v416, %v414
  %v475 = vpack.c.b16 %v419, %v417
  %v476 = vpack.c.b16 %v420, %v418
  %v477 = vpack.c.b16 %v423, %v421
  %v478 = vpack.c.b16 %v424, %v422
  %v479 = vpack.c.b16 %v427, %v425
  %v480 = vpack.c.b16 %v428, %v426
  %v481 = vpack.c.b16 %v431, %v429
  %v482 = vpack.c.b16 %v432, %v430
  %v483 = vpack.c.b16 %v435, %v433
  %v484 = vpack.c.b16 %v436, %v434
  %v485 = vpack.c.b16 %v439, %v437
  %v486 = vpack.c.b16 %v440, %v438
  %v487 = vpack.c.b16 %v443, %v441
  %v488 = vpack.c.b16 %v444, %v442
  %v489 = vpack.c.b16 %v447, %v445
  %v490 = vpack.c.b16 %v448, %v446
  %v491 = vpack.c.b16 %v451, %v449
  %v492 = vpack.c.b16 %v452, %v450
  %v493 = vpack.c.b16 %v455, %v453
  %v494 = vpack.c.b16 %v456, %v454
  %v495 = vpack.c.b16 %v459, %v457
  %v496 = vpack.c.b16 %v460, %v458
  %v497 = vpack.c.b16 %v463, %v461
  %v498 = vpack.c.b16 %v464, %v462
  %v499 = vpack.c.b16 %v467, %v465
  %v500 = vpack.c.b16 %v468, %v466
  %533 = vmatprep.subr.bf16.mxu0 %v484
  %534 = vmatpush1.bf16.msra.mxu0 %v483
  %535 = vmatprep.subr.bf16.mxu0 %v482
  %536 = vmatpush1.bf16.msra.mxu0 %v481
  %537 = vmatprep.subr.bf16.mxu0 %v480
  %538 = vmatpush1.bf16.msra.mxu0 %v479
  %539 = vmatprep.subr.bf16.mxu0 %v478
  %540 = vmatpush1.bf16.msra.mxu0 %v477
  %541 = vmatprep.subr.bf16.mxu0 %v476
  %542 = vmatpush1.bf16.msra.mxu0 %v475
  %543 = vmatprep.subr.bf16.mxu0 %v474
  %544 = vmatpush1.bf16.msra.mxu0 %v473
  %545 = vmatprep.subr.bf16.mxu0 %v472
  %546 = vmatpush1.bf16.msra.mxu0 %v471
  %547 = vmatprep.subr.bf16.mxu0 %v470
  %548 = vmatpush1.bf16.msra.mxu0 %v469
  %549 = vmatprep.subr.bf16.mxu0 %v500
  %550 = vmatpush2.bf16.msra.mxu0 %v499
  %551 = vmatprep.subr.bf16.mxu0 %v498
  %552 = vmatpush2.bf16.msra.mxu0 %v497
  %553 = vmatprep.subr.bf16.mxu0 %v496
  %554 = vmatpush2.bf16.msra.mxu0 %v495
  %555 = vmatprep.subr.bf16.mxu0 %v494
  %556 = vmatpush2.bf16.msra.mxu0 %v493
  %557 = vmatprep.subr.bf16.mxu0 %v492
  %558 = vmatpush2.bf16.msra.mxu0 %v491
  %559 = vmatprep.subr.bf16.mxu0 %v490
  %560 = vmatpush2.bf16.msra.mxu0 %v489
  %561 = vmatprep.subr.bf16.mxu0 %v488
  %562 = vmatpush2.bf16.msra.mxu0 %v487
  %563 = vmatprep.subr.bf16.mxu0 %v486
  %564 = vmatpush2.bf16.msra.mxu0 %v485
  %565 = vmatprep.mubr.bf16.mxu0 %v354
  %566 = vmatmul.mubr.bf16.gmra.mxu0 %v353
  %v567 = vpop.f32.mrf.mxu0
  %v568 = vadd.f32 %v368, %v567
  %v569 = vpop.f32.mrf.mxu0
  %v570 = vadd.f32 %v372, %v569
  %v571 = vpop.f32.mrf.mxu0
  %v572 = vpop.f32.mrf.mxu0
  %573 = vdwg.mxu0
  %v574 = vpack.c.bf16 %v568, %v568
  %v575 = vpack.c.bf16 %v570, %v570
  %v576 = vunpack.c.l.bf16 %v574
  %v577 = vunpack.c.l.bf16 %v575
  %v578 = vsub.f32 %v568, %v576
  %v579 = vsub.f32 %v570, %v577
  %v580 = vpack.c.bf16 %v578, %v578
  %v581 = vpack.c.bf16 %v579, %v579
  %v614 = vunpack.c.l.b16 %v98
  %v615 = vunpack.c.h.b16 %v98
  %v616 = vunpack.c.l.b16 %v99
  %v617 = vunpack.c.h.b16 %v99
  %v618 = vunpack.c.l.b16 %v100
  %v619 = vunpack.c.h.b16 %v100
  %v620 = vunpack.c.l.b16 %v101
  %v621 = vunpack.c.h.b16 %v101
  %v622 = vunpack.c.l.b16 %v102
  %v623 = vunpack.c.h.b16 %v102
  %v624 = vunpack.c.l.b16 %v103
  %v625 = vunpack.c.h.b16 %v103
  %v626 = vunpack.c.l.b16 %v104
  %v627 = vunpack.c.h.b16 %v104
  %v628 = vunpack.c.l.b16 %v105
  %v629 = vunpack.c.h.b16 %v105
  %v630 = vunpack.c.l.b16 %v106
  %v631 = vunpack.c.h.b16 %v106
  %v632 = vunpack.c.l.b16 %v107
  %v633 = vunpack.c.h.b16 %v107
  %v634 = vunpack.c.l.b16 %v108
  %v635 = vunpack.c.h.b16 %v108
  %v636 = vunpack.c.l.b16 %v109
  %v637 = vunpack.c.h.b16 %v109
  %v638 = vunpack.c.l.b16 %v110
  %v639 = vunpack.c.h.b16 %v110
  %v640 = vunpack.c.l.b16 %v111
  %v641 = vunpack.c.h.b16 %v111
  %v642 = vunpack.c.l.b16 %v112
  %v643 = vunpack.c.h.b16 %v112
  %v644 = vunpack.c.l.b16 %v113
  %v645 = vunpack.c.h.b16 %v113
  %v646 = vunpack.c.l.b16 %v114
  %v647 = vunpack.c.h.b16 %v114
  %v648 = vunpack.c.l.b16 %v115
  %v649 = vunpack.c.h.b16 %v115
  %v650 = vunpack.c.l.b16 %v116
  %v651 = vunpack.c.h.b16 %v116
  %v652 = vunpack.c.l.b16 %v117
  %v653 = vunpack.c.h.b16 %v117
  %v654 = vunpack.c.l.b16 %v118
  %v655 = vunpack.c.h.b16 %v118
  %v656 = vunpack.c.l.b16 %v119
  %v657 = vunpack.c.h.b16 %v119
  %v658 = vunpack.c.l.b16 %v120
  %v659 = vunpack.c.h.b16 %v120
  %v660 = vunpack.c.l.b16 %v121
  %v661 = vunpack.c.h.b16 %v121
  %v662 = vunpack.c.l.b16 %v122
  %v663 = vunpack.c.h.b16 %v122
  %v664 = vunpack.c.l.b16 %v123
  %v665 = vunpack.c.h.b16 %v123
  %v666 = vunpack.c.l.b16 %v124
  %v667 = vunpack.c.h.b16 %v124
  %v668 = vunpack.c.l.b16 %v125
  %v669 = vunpack.c.h.b16 %v125
  %v670 = vunpack.c.l.b16 %v126
  %v671 = vunpack.c.h.b16 %v126
  %v672 = vunpack.c.l.b16 %v127
  %v673 = vunpack.c.h.b16 %v127
  %v674 = vunpack.c.l.b16 %v128
  %v675 = vunpack.c.h.b16 %v128
  %v676 = vunpack.c.l.b16 %v129
  %v677 = vunpack.c.h.b16 %v129
  %v678 = vpack.c.b16 %v616, %v614
  %v679 = vpack.c.b16 %v617, %v615
  %v680 = vpack.c.b16 %v620, %v618
  %v681 = vpack.c.b16 %v621, %v619
  %v682 = vpack.c.b16 %v624, %v622
  %v683 = vpack.c.b16 %v625, %v623
  %v684 = vpack.c.b16 %v628, %v626
  %v685 = vpack.c.b16 %v629, %v627
  %v686 = vpack.c.b16 %v632, %v630
  %v687 = vpack.c.b16 %v633, %v631
  %v688 = vpack.c.b16 %v636, %v634
  %v689 = vpack.c.b16 %v637, %v635
  %v690 = vpack.c.b16 %v640, %v638
  %v691 = vpack.c.b16 %v641, %v639
  %v692 = vpack.c.b16 %v644, %v642
  %v693 = vpack.c.b16 %v645, %v643
  %v694 = vpack.c.b16 %v648, %v646
  %v695 = vpack.c.b16 %v649, %v647
  %v696 = vpack.c.b16 %v652, %v650
  %v697 = vpack.c.b16 %v653, %v651
  %v698 = vpack.c.b16 %v656, %v654
  %v699 = vpack.c.b16 %v657, %v655
  %v700 = vpack.c.b16 %v660, %v658
  %v701 = vpack.c.b16 %v661, %v659
  %v702 = vpack.c.b16 %v664, %v662
  %v703 = vpack.c.b16 %v665, %v663
  %v704 = vpack.c.b16 %v668, %v666
  %v705 = vpack.c.b16 %v669, %v667
  %v706 = vpack.c.b16 %v672, %v670
  %v707 = vpack.c.b16 %v673, %v671
  %v708 = vpack.c.b16 %v676, %v674
  %v709 = vpack.c.b16 %v677, %v675
  %742 = vmatprep.subr.bf16.mxu0 %v693
  %743 = vmatpush1.bf16.msra.mxu0 %v692
  %744 = vmatprep.subr.bf16.mxu0 %v691
  %745 = vmatpush1.bf16.msra.mxu0 %v690
  %746 = vmatprep.subr.bf16.mxu0 %v689
  %747 = vmatpush1.bf16.msra.mxu0 %v688
  %748 = vmatprep.subr.bf16.mxu0 %v687
  %749 = vmatpush1.bf16.msra.mxu0 %v686
  %750 = vmatprep.subr.bf16.mxu0 %v685
  %751 = vmatpush1.bf16.msra.mxu0 %v684
  %752 = vmatprep.subr.bf16.mxu0 %v683
  %753 = vmatpush1.bf16.msra.mxu0 %v682
  %754 = vmatprep.subr.bf16.mxu0 %v681
  %755 = vmatpush1.bf16.msra.mxu0 %v680
  %756 = vmatprep.subr.bf16.mxu0 %v679
  %757 = vmatpush1.bf16.msra.mxu0 %v678
  %758 = vmatprep.subr.bf16.mxu0 %v709
  %759 = vmatpush2.bf16.msra.mxu0 %v708
  %760 = vmatprep.subr.bf16.mxu0 %v707
  %761 = vmatpush2.bf16.msra.mxu0 %v706
  %762 = vmatprep.subr.bf16.mxu0 %v705
  %763 = vmatpush2.bf16.msra.mxu0 %v704
  %764 = vmatprep.subr.bf16.mxu0 %v703
  %765 = vmatpush2.bf16.msra.mxu0 %v702
  %766 = vmatprep.subr.bf16.mxu0 %v701
  %767 = vmatpush2.bf16.msra.mxu0 %v700
  %768 = vmatprep.subr.bf16.mxu0 %v699
  %769 = vmatpush2.bf16.msra.mxu0 %v698
  %770 = vmatprep.subr.bf16.mxu0 %v697
  %771 = vmatpush2.bf16.msra.mxu0 %v696
  %772 = vmatprep.subr.bf16.mxu0 %v695
  %773 = vmatpush2.bf16.msra.mxu0 %v694
  %774 = vmatprep.mubr.bf16.mxu0 %v581
  %775 = vmatmul.mubr.bf16.gmra.mxu0 %v580
  %v776 = vpop.f32.mrf.mxu0
  %v777 = vadd.f32 0.0, %v776
  %v778 = vpop.f32.mrf.mxu0
  %v779 = vadd.f32 0.0, %v778
  %v780 = vpop.f32.mrf.mxu0
  %v781 = vpop.f32.mrf.mxu0
  %782 = vdwg.mxu0
  %783 = vmatprep.subr.bf16.mxu0 %v693
  %784 = vmatpush1.bf16.msra.mxu0 %v692
  %785 = vmatprep.subr.bf16.mxu0 %v691
  %786 = vmatpush1.bf16.msra.mxu0 %v690
  %787 = vmatprep.subr.bf16.mxu0 %v689
  %788 = vmatpush1.bf16.msra.mxu0 %v688
  %789 = vmatprep.subr.bf16.mxu0 %v687
  %790 = vmatpush1.bf16.msra.mxu0 %v686
  %791 = vmatprep.subr.bf16.mxu0 %v685
  %792 = vmatpush1.bf16.msra.mxu0 %v684
  %793 = vmatprep.subr.bf16.mxu0 %v683
  %794 = vmatpush1.bf16.msra.mxu0 %v682
  %795 = vmatprep.subr.bf16.mxu0 %v681
  %796 = vmatpush1.bf16.msra.mxu0 %v680
  %797 = vmatprep.subr.bf16.mxu0 %v679
  %798 = vmatpush1.bf16.msra.mxu0 %v678
  %799 = vmatprep.subr.bf16.mxu0 %v709
  %800 = vmatpush2.bf16.msra.mxu0 %v708
  %801 = vmatprep.subr.bf16.mxu0 %v707
  %802 = vmatpush2.bf16.msra.mxu0 %v706
  %803 = vmatprep.subr.bf16.mxu0 %v705
  %804 = vmatpush2.bf16.msra.mxu0 %v704
  %805 = vmatprep.subr.bf16.mxu0 %v703
  %806 = vmatpush2.bf16.msra.mxu0 %v702
  %807 = vmatprep.subr.bf16.mxu0 %v701
  %808 = vmatpush2.bf16.msra.mxu0 %v700
  %809 = vmatprep.subr.bf16.mxu0 %v699
  %810 = vmatpush2.bf16.msra.mxu0 %v698
  %811 = vmatprep.subr.bf16.mxu0 %v697
  %812 = vmatpush2.bf16.msra.mxu0 %v696
  %813 = vmatprep.subr.bf16.mxu0 %v695
  %814 = vmatpush2.bf16.msra.mxu0 %v694
  %815 = vmatprep.mubr.bf16.mxu0 %v575
  %816 = vmatmul.mubr.bf16.gmra.mxu0 %v574
  %v817 = vpop.f32.mrf.mxu0
  %v818 = vadd.f32 %v777, %v817
  %v819 = vpop.f32.mrf.mxu0
  %v820 = vadd.f32 %v779, %v819
  %v821 = vpop.f32.mrf.mxu0
  %v822 = vpop.f32.mrf.mxu0
  %823 = vdwg.mxu0
  %v824 = vmul.f32 %v568, %v568
  %v825 = vmul.f32 %v570, %v570
  %v826 = vpack.c.bf16 %v824, %v824
  %v827 = vpack.c.bf16 %v825, %v825
  %v828 = vunpack.c.l.bf16 %v826
  %v829 = vunpack.c.l.bf16 %v827
  %v830 = vsub.f32 %v824, %v828
  %v831 = vsub.f32 %v825, %v829
  %v832 = vpack.c.bf16 %v830, %v830
  %v833 = vpack.c.bf16 %v831, %v831
  %834 = vmatprep.subr.bf16.mxu0 %v693
  %835 = vmatpush1.bf16.msra.mxu0 %v692
  %836 = vmatprep.subr.bf16.mxu0 %v691
  %837 = vmatpush1.bf16.msra.mxu0 %v690
  %838 = vmatprep.subr.bf16.mxu0 %v689
  %839 = vmatpush1.bf16.msra.mxu0 %v688
  %840 = vmatprep.subr.bf16.mxu0 %v687
  %841 = vmatpush1.bf16.msra.mxu0 %v686
  %842 = vmatprep.subr.bf16.mxu0 %v685
  %843 = vmatpush1.bf16.msra.mxu0 %v684
  %844 = vmatprep.subr.bf16.mxu0 %v683
  %845 = vmatpush1.bf16.msra.mxu0 %v682
  %846 = vmatprep.subr.bf16.mxu0 %v681
  %847 = vmatpush1.bf16.msra.mxu0 %v680
  %848 = vmatprep.subr.bf16.mxu0 %v679
  %849 = vmatpush1.bf16.msra.mxu0 %v678
  %850 = vmatprep.subr.bf16.mxu0 %v709
  %851 = vmatpush2.bf16.msra.mxu0 %v708
  %852 = vmatprep.subr.bf16.mxu0 %v707
  %853 = vmatpush2.bf16.msra.mxu0 %v706
  %854 = vmatprep.subr.bf16.mxu0 %v705
  %855 = vmatpush2.bf16.msra.mxu0 %v704
  %856 = vmatprep.subr.bf16.mxu0 %v703
  %857 = vmatpush2.bf16.msra.mxu0 %v702
  %858 = vmatprep.subr.bf16.mxu0 %v701
  %859 = vmatpush2.bf16.msra.mxu0 %v700
  %860 = vmatprep.subr.bf16.mxu0 %v699
  %861 = vmatpush2.bf16.msra.mxu0 %v698
  %862 = vmatprep.subr.bf16.mxu0 %v697
  %863 = vmatpush2.bf16.msra.mxu0 %v696
  %864 = vmatprep.subr.bf16.mxu0 %v695
  %865 = vmatpush2.bf16.msra.mxu0 %v694
  %866 = vmatprep.mubr.bf16.mxu0 %v833
  %867 = vmatmul.mubr.bf16.gmra.mxu0 %v832
  %v868 = vpop.f32.mrf.mxu0
  %v869 = vadd.f32 0.0, %v868
  %v870 = vpop.f32.mrf.mxu0
  %v871 = vadd.f32 0.0, %v870
  %v872 = vpop.f32.mrf.mxu0
  %v873 = vpop.f32.mrf.mxu0
  %874 = vdwg.mxu0
  %875 = vmatprep.subr.bf16.mxu0 %v693
  %876 = vmatpush1.bf16.msra.mxu0 %v692
  %877 = vmatprep.subr.bf16.mxu0 %v691
  %878 = vmatpush1.bf16.msra.mxu0 %v690
  %879 = vmatprep.subr.bf16.mxu0 %v689
  %880 = vmatpush1.bf16.msra.mxu0 %v688
  %881 = vmatprep.subr.bf16.mxu0 %v687
  %882 = vmatpush1.bf16.msra.mxu0 %v686
  %883 = vmatprep.subr.bf16.mxu0 %v685
  %884 = vmatpush1.bf16.msra.mxu0 %v684
  %885 = vmatprep.subr.bf16.mxu0 %v683
  %886 = vmatpush1.bf16.msra.mxu0 %v682
  %887 = vmatprep.subr.bf16.mxu0 %v681
  %888 = vmatpush1.bf16.msra.mxu0 %v680
  %889 = vmatprep.subr.bf16.mxu0 %v679
  %890 = vmatpush1.bf16.msra.mxu0 %v678
  %891 = vmatprep.subr.bf16.mxu0 %v709
  %892 = vmatpush2.bf16.msra.mxu0 %v708
  %893 = vmatprep.subr.bf16.mxu0 %v707
  %894 = vmatpush2.bf16.msra.mxu0 %v706
  %895 = vmatprep.subr.bf16.mxu0 %v705
  %896 = vmatpush2.bf16.msra.mxu0 %v704
  %897 = vmatprep.subr.bf16.mxu0 %v703
  %898 = vmatpush2.bf16.msra.mxu0 %v702
  %899 = vmatprep.subr.bf16.mxu0 %v701
  %900 = vmatpush2.bf16.msra.mxu0 %v700
  %901 = vmatprep.subr.bf16.mxu0 %v699
  %902 = vmatpush2.bf16.msra.mxu0 %v698
  %903 = vmatprep.subr.bf16.mxu0 %v697
  %904 = vmatpush2.bf16.msra.mxu0 %v696
  %905 = vmatprep.subr.bf16.mxu0 %v695
  %906 = vmatpush2.bf16.msra.mxu0 %v694
  %907 = vmatprep.mubr.bf16.mxu0 %v827
  %908 = vmatmul.mubr.bf16.gmra.mxu0 %v826
  %v909 = vpop.f32.mrf.mxu0
  %v910 = vadd.f32 %v869, %v909
  %v911 = vpop.f32.mrf.mxu0
  %v912 = vadd.f32 %v871, %v911
  %v913 = vpop.f32.mrf.mxu0
  %v914 = vpop.f32.mrf.mxu0
  %915 = vdwg.mxu0
  %v916 = vmul.f32 %v818, %v818
  %v917 = vmul.f32 %v820, %v820
  %v918 = vsub.f32 %v910, %v916
  %v919 = vsub.f32 %v912, %v917
  %v920 = vmax.f32 %v918, 0.0
  %v921 = vmax.f32 %v919, 0.0
  %v922 = vsub.f32 %v568, %v818
  %v923 = vsub.f32 %v570, %v820
  %v924 = vadd.f32 %v920, 1e-05
  %v925 = vadd.f32 %v921, 1e-05
  %v926 = vrsqrt.pop %v924
  %v927 = vrsqrt.pop %v925
  %v928 = vmul.f32 %v922, %v926
  %v929 = vmul.f32 %v923, %v927
  %v930 = vlaneseq
  %v931 = vshrl.u32 %v930, 7
  %v932 = vsub.s32 2, %v931
  %v933 = vrot.slane %v130, %v932
  %v934 = vlaneseq
  %v935 = vshrl.u32 %v934, 7
  %v936 = vsub.s32 6, %v935
  %v937 = vrot.slane %v130, %v936
  %v940 = vlaneseq
  %v941 = vshrl.u32 %v940, 7
  %v942 = vsub.s32 2, %v941
  %v943 = vrot.slane %v933, %v942
  %v944 = vlaneseq
  %v945 = vshrl.u32 %v944, 7
  %v946 = vsub.s32 2, %v945
  %v947 = vrot.slane %v937, %v946
  %v948 = vmul.f32 %v928, %v943
  %v949 = vmul.f32 %v929, %v947
  %v950 = vlaneseq
  %v951 = vshrl.u32 %v950, 7
  %v952 = vsub.s32 3, %v951
  %v953 = vrot.slane %v130, %v952
  %v954 = vlaneseq
  %v955 = vshrl.u32 %v954, 7
  %v956 = vsub.s32 7, %v955
  %v957 = vrot.slane %v130, %v956
  %v960 = vlaneseq
  %v961 = vshrl.u32 %v960, 7
  %v962 = vsub.s32 3, %v961
  %v963 = vrot.slane %v953, %v962
  %v964 = vlaneseq
  %v965 = vshrl.u32 %v964, 7
  %v966 = vsub.s32 3, %v965
  %v967 = vrot.slane %v957, %v966
  %v968 = vadd.f32 %v948, %v963
  %v969 = vadd.f32 %v949, %v967
  %v972 = vcombine.low %v968, %v969
  %v974 = vunpack.c.l.s4 1983009808
  %v975 = vunpack.c.0.s8 %v974
  %v976 = vlaneseq
  %v977 = vshrl.u32 %v976, 7
  %v978 = vsub.s32 %v975, %v977
  %v979 = vrot.slane %v972, %v978
  %981 = vst [vmem:[%s5] sm:$0xf] %v979
  // Predicated region
  $region22: #{init_embedder_1d.1} parent=0 // pred_check
    _
  $region23: #{init_embedder_1d.1} parent=0 // pred_check_branch
    %983 = sbr.rel (0) target = $region25
  $region24: #{init_embedder_1d.1} parent=0 // pred_region
    _
  $region25: #{init_embedder_1d.1} parent=0 // pred_fallthru
    _
  // Predicated region
  $region26: #{init_embedder_1d.1} parent=0 // pred_check
    _
  $region27: #{init_embedder_1d.1} parent=0 // pred_check_branch
    %985 = sbr.rel (0) target = $region29
  $region28: #{init_embedder_1d.1} parent=0 // pred_region
    _
  $region29: #{init_embedder_1d.1} parent=0 // pred_fallthru
    _

</llo_original>
